<compile_context>
chip_gen: v5e
topology: v5e:2x2
jax: 0.10.0
libtpu: 0.0.40
codegen_flags: <defaults>
</compile_context>

<pallas_src>
import jax
import jax.numpy as jnp
from jax import lax
from jax.experimental import pallas as pl
from jax.experimental.pallas import tpu as pltpu


def _round_up(x, m):
    return (x + m - 1) // m * m


# ---------------------------------------------------------------------------
# Parallel rows-tiled matmul + bias kernel (input projection & output proj).
# ---------------------------------------------------------------------------
def _matmul_bias_kernel(x_ref, w_ref, b_ref, o_ref):
    o_ref[...] = (jnp.dot(x_ref[...].astype(w_ref.dtype), w_ref[...],
                          preferred_element_type=jnp.float32)
                  + b_ref[...])


def _rows_matmul_bias(x, w, b, *, tile_rows):
    R, K = x.shape
    N = w.shape[1]
    assert R % tile_rows == 0
    return pl.pallas_call(
        _matmul_bias_kernel,
        grid=(R // tile_rows,),
        in_specs=[pl.BlockSpec((tile_rows, K), lambda i: (i, 0)),
                  pl.BlockSpec((K, N), lambda i: (0, 0)),
                  pl.BlockSpec((1, N), lambda i: (0, 0))],
        out_specs=pl.BlockSpec((tile_rows, N), lambda i: (i, 0)),
        out_shape=jax.ShapeDtypeStruct((R, N), jnp.float32),
        compiler_params=pltpu.CompilerParams(
            dimension_semantics=("parallel",)),  # both TCs on v7x
    )(x, w, b)


# ---------------------------------------------------------------------------
# Serial LSTM recurrence kernel (one grid step = `time_chunk` LSTM steps).
# ---------------------------------------------------------------------------
def _qgen_recurrence_kernel(xg_ref, len_ref, img_ref, w_img_ref, b_img_ref,
                            w_ihi_ref, w_hh_ref,
                            hout_ref, hn_ref, cn_ref,
                            h_scr, c_scr, imgg_scr):
    chunk = pl.program_id(0)
    ts = xg_ref.shape[0]          # static time-chunk size
    H = hn_ref.shape[-1]

    @pl.when(chunk == 0)
    def _init():
        h_scr[...] = jnp.zeros_like(h_scr)
        c_scr[...] = jnp.zeros_like(c_scr)
        # img_mlp + hoisted image->gates contribution, computed once.
        img_h = (jnp.dot(img_ref[...].astype(w_img_ref.dtype), w_img_ref[...],
                         preferred_element_type=jnp.float32)
                 + b_img_ref[...])
        imgg_scr[...] = jnp.dot(img_h.astype(w_ihi_ref.dtype), w_ihi_ref[...],
                                preferred_element_type=jnp.float32)

    img_g = imgg_scr[...]          # (B, 4H)  time-invariant gate offset
    w_hh = w_hh_ref[...]           # (H, 4H)  fused recurrent weights
    lens = len_ref[...]            # (B, 1)   int32 sequence lengths
    t0 = chunk * ts

    def step(s, carry):
        h, c = carry
        # fused gates: precomputed x-part (+ lstm bias) + img part + recurrent
        gates = (xg_ref[s] + img_g
                 + jnp.dot(h.astype(w_hh.dtype), w_hh,
                           preferred_element_type=jnp.float32))   # (B, 4H)
        i_g = jax.nn.sigmoid(gates[:, 0 * H:1 * H])
        f_g = jax.nn.sigmoid(gates[:, 1 * H:2 * H])
        g_g = jnp.tanh(gates[:, 2 * H:3 * H])
        o_g = jax.nn.sigmoid(gates[:, 3 * H:4 * H])
        c_new = f_g * c + i_g * g_g
        h_new = o_g * jnp.tanh(c_new)
        # pack_padded_sequence: freeze state & zero output past wrd_len.
        valid = (t0 + s) < lens                       # (B, 1) bool
        hout_ref[s] = jnp.where(valid, h_new, 0.0)
        return jnp.where(valid, h_new, h), jnp.where(valid, c_new, c)

    h_fin, c_fin = lax.fori_loop(0, ts, step, (h_scr[...], c_scr[...]),
                                 unroll=True)
    h_scr[...] = h_fin
    c_scr[...] = c_fin
    # Written every chunk (not only at the last one) so the resident output
    # block is always valid regardless of writeback policy.
    hn_ref[...] = h_fin
    cn_ref[...] = c_fin


# ---------------------------------------------------------------------------
# Wrapper
# ---------------------------------------------------------------------------
def _fuse_gate_weights(w):
    # (4, K, H) per-gate (PyTorch order i,f,g,o) -> (K, 4H) fused.
    four, K, H = w.shape
    return jnp.transpose(w, (1, 0, 2)).reshape(K, four * H)


def qgen_forward(wrds, wrd_len, img_feat, params, *,
                 time_chunk=8, param_dtype=jnp.float32):
    """Pallas equivalent of QGenModel.forward (mask=None).
    Returns (logits (B,T,V), (h_n (B,H), c_n (B,H)))."""
    (embed_tbl, w_img, b_img, w_ih_e, w_ih_i, w_hh, b_lstm, wp, bp) = params
    B, T = wrds.shape
    E = embed_tbl.shape[1]
    F = img_feat.shape[1]
    Hi = w_img.shape[1]
    H = w_hh.shape[-1]
    V = wp.shape[1]
    G = 4 * H

    # Fuse the 4 gates into single (K, 4H) operands; optionally bf16 weights.
    w_ih_e4 = _fuse_gate_weights(w_ih_e).astype(param_dtype)   # (E, 4H)
    w_ih_i4 = _fuse_gate_weights(w_ih_i).astype(param_dtype)   # (Hi, 4H)
    w_hh4 = _fuse_gate_weights(w_hh).astype(param_dtype)       # (H, 4H)
    b_lstm4 = jnp.transpose(b_lstm, (1, 0, 2)).reshape(1, G)   # (1, 4H) f32
    w_img_c = w_img.astype(param_dtype)
    b_img_c = b_img.astype(jnp.float32)
    wp_c = wp.astype(param_dtype)

    # Lane/sublane-dense padding: batch -> mult of 8, vocab -> mult of 128.
    B_pad = _round_up(B, 8)
    T_pad = _round_up(T, time_chunk)
    V_pad = _round_up(V, 128)

    emb = jnp.take(embed_tbl, wrds, axis=0)                    # (B, T, E)
    emb_tm = jnp.transpose(emb, (1, 0, 2))                     # (T, B, E)
    emb_tm = jnp.pad(emb_tm, ((0, T_pad - T), (0, B_pad - B), (0, 0)))
    lens = jnp.pad(wrd_len.astype(jnp.int32), (0, B_pad - B)).reshape(B_pad, 1)
    img_p = jnp.pad(img_feat, ((0, B_pad - B), (0, 0)))
    wp_p = jnp.pad(wp_c, ((0, 0), (0, V_pad - V)))
    bp_p = jnp.pad(bp.astype(jnp.float32), ((0, 0), (0, V_pad - V)))

    rows = T_pad * B_pad
    tile_rows = B_pad * time_chunk

    # 1) Hoisted input-to-hidden projection (parallel, off the serial path).
    #    LSTM bias is folded in here (counted once per step).
    x_gates = _rows_matmul_bias(emb_tm.reshape(rows, E), w_ih_e4, b_lstm4,
                                tile_rows=tile_rows)
    x_gates = x_gates.reshape(T_pad, B_pad, G)

    # 2) Serial recurrence over time chunks.
    h_out, h_n, c_n = pl.pallas_call(
        _qgen_recurrence_kernel,
        grid=(T_pad // time_chunk,),
        in_specs=[
            pl.BlockSpec((time_chunk, B_pad, G), lambda c: (c, 0, 0)),  # x_gates
            pl.BlockSpec((B_pad, 1), lambda c: (0, 0)),                 # lengths
            pl.BlockSpec((B_pad, F), lambda c: (0, 0)),                 # img_feat
            pl.BlockSpec((F, Hi), lambda c: (0, 0)),                    # img_mlp W
            pl.BlockSpec((1, Hi), lambda c: (0, 0)),                    # img_mlp b
            pl.BlockSpec((Hi, G), lambda c: (0, 0)),                    # W_ih (img)
            pl.BlockSpec((H, G), lambda c: (0, 0)),                     # W_hh fused
        ],
        out_specs=[
            pl.BlockSpec((time_chunk, B_pad, H), lambda c: (c, 0, 0)),  # h_out
            pl.BlockSpec((B_pad, H), lambda c: (0, 0)),                 # h_n
            pl.BlockSpec((B_pad, H), lambda c: (0, 0)),                 # c_n
        ],
        out_shape=[
            jax.ShapeDtypeStruct((T_pad, B_pad, H), jnp.float32),
            jax.ShapeDtypeStruct((B_pad, H), jnp.float32),
            jax.ShapeDtypeStruct((B_pad, H), jnp.float32),
        ],
        scratch_shapes=[pltpu.VMEM((B_pad, H), jnp.float32),   # h state
                        pltpu.VMEM((B_pad, H), jnp.float32),   # c state
                        pltpu.VMEM((B_pad, G), jnp.float32)],  # img gate offset
        compiler_params=pltpu.CompilerParams(
            dimension_semantics=("arbitrary",)),   # time axis is sequential
    )(x_gates, lens, img_p, w_img_c, b_img_c, w_ih_i4, w_hh4)

    # 3) Hoisted output projection (parallel, lane-dense padded vocab).
    logits2d = _rows_matmul_bias(h_out.reshape(rows, H), wp_p, bp_p,
                                 tile_rows=tile_rows)
    logits = logits2d.reshape(T_pad, B_pad, V_pad)
    logits = jnp.transpose(logits, (1, 0, 2))[:B, :T, :V]      # (B, T, V)
    return logits, (h_n[:B], c_n[:B])


# ---------------------------------------------------------------------------
# Pure-JAX reference mirroring the PyTorch semantics (packed sequences).
# ---------------------------------------------------------------------------
def _reference_forward(wrds, wrd_len, img_feat, params):
    (embed_tbl, w_img, b_img, w_ih_e, w_ih_i, w_hh, b_lstm, wp, bp) = params
    B, T = wrds.shape
    H = w_hh.shape[-1]
    emb = jnp.take(embed_tbl, wrds, axis=0)
    img_h = img_feat @ w_img + b_img
    h = jnp.zeros((B, H), jnp.float32)
    c = jnp.zeros((B, H), jnp.float32)
    logits = []
    for t in range(T):
        x_e = emb[:, t, :]
        g = [x_e @ w_ih_e[k] + img_h @ w_ih_i[k] + h @ w_hh[k] + b_lstm[k]
             for k in range(4)]
        i_g = jax.nn.sigmoid(g[0]); f_g = jax.nn.sigmoid(g[1])
        g_g = jnp.tanh(g[2]); o_g = jax.nn.sigmoid(g[3])
        c_new = f_g * c + i_g * g_g
        h_new = o_g * jnp.tanh(c_new)
        valid = (t < wrd_len)[:, None].astype(jnp.float32)
        h = valid * h_new + (1.0 - valid) * h
        c = valid * c_new + (1.0 - valid) * c
        logits.append((valid * h_new) @ wp + bp)
    return jnp.stack(logits, axis=1), (h, c)


if __name__ == "__main__":
    # Small, module-consistent shapes.
    B, T = 2, 8
    num_wrds, wrd_embed_size, wrd_pad_id = 64, 16, 0
    img_feat_size, img_hidden_size, lstm_hidden_size = 24, 16, 32
    V, E, F, Hi, H = (num_wrds, wrd_embed_size, img_feat_size,
                      img_hidden_size, lstm_hidden_size)

    key = jax.random.PRNGKey(0)
    ks = jax.random.split(key, 12)
    s = 0.1
    embed_tbl = (jax.random.normal(ks[0], (V, E), jnp.float32) * s
                 ).at[wrd_pad_id].set(0.0)                       # padding_idx row
    w_img = jax.random.normal(ks[1], (F, Hi), jnp.float32) * s
    b_img = jax.random.normal(ks[2], (1, Hi), jnp.float32) * s
    w_ih_e = jax.random.normal(ks[3], (4, E, H), jnp.float32) * s   # W_ih word rows
    w_ih_i = jax.random.normal(ks[4], (4, Hi, H), jnp.float32) * s  # W_ih img rows
    w_hh = jax.random.normal(ks[5], (4, H, H), jnp.float32) * s
    b_lstm = jax.random.normal(ks[6], (4, 1, H), jnp.float32) * s   # b_ih + b_hh
    wp = jax.random.normal(ks[7], (H, V), jnp.float32) * s
    bp = jax.random.normal(ks[8], (1, V), jnp.float32) * s
    params = (embed_tbl, w_img, b_img, w_ih_e, w_ih_i, w_hh, b_lstm, wp, bp)

    # Inputs: variable-length word sequences (padded with pad_id) + image feats.
    wrd_len = jnp.array([T, 5], dtype=jnp.int32)
    wrds = jax.random.randint(ks[9], (B, T), 1, V, dtype=jnp.int32)
    t_idx = jnp.arange(T)[None, :]
    wrds = jnp.where(t_idx < wrd_len[:, None], wrds, wrd_pad_id)
    img_feat = jax.random.normal(ks[10], (B, F), jnp.float32)

    # f32 path (tight check against the reference).
    logits, (h_n, c_n) = qgen_forward(wrds, wrd_len, img_feat, params,
                                      time_chunk=8, param_dtype=jnp.float32)
    jax.block_until_ready(logits)

    ref_logits, (ref_h, ref_c) = _reference_forward(wrds, wrd_len, img_feat, params)
    assert logits.shape == (B, T, V)
    assert jnp.allclose(logits, ref_logits, atol=1e-3, rtol=1e-3)
    assert jnp.allclose(h_n, ref_h, atol=1e-3, rtol=1e-3)
    assert jnp.allclose(c_n, ref_c, atol=1e-3, rtol=1e-3)

    # bf16-weights path (MXU-native on v5e/v6e/v7x; elementwise math stays f32).
    logits_bf, (h_bf, c_bf) = qgen_forward(wrds, wrd_len, img_feat, params,
                                           time_chunk=8,
                                           param_dtype=jnp.bfloat16)
    jax.block_until_ready(logits_bf)
    assert jnp.allclose(logits_bf, ref_logits, atol=5e-2, rtol=5e-2)
    assert jnp.allclose(h_bf, ref_h, atol=5e-2, rtol=5e-2)

    # TODO(synk): generate()/step() autoregressive sampling loop (host-side
    # data-dependent early exit + multinomial sampling) is not implemented
    # as a kernel.
    print("KERNEL_OK")
</pallas_src>

<mosaic_0001>
module attributes {stable_mosaic.version = 11 : i64} {
  func.func @_matmul_bias_kernel(%arg0: i32, %arg1: memref<64x16xf32, #tpu.memory_space<vmem>>, %arg2: memref<16x128xf32, #tpu.memory_space<vmem>>, %arg3: memref<1x128xf32, #tpu.memory_space<vmem>>, %arg4: memref<64x128xf32, #tpu.memory_space<vmem>>) attributes {dimension_semantics = [#tpu.dimension_semantics<parallel>], iteration_bounds = array<i64: 1>, scalar_prefetch = 0 : i64, scratch_operands = 0 : i64, tpu.core_type = #tpu.core_type<tc>, window_params = [{transform_indices = @transform_0, window_bounds = array<i64: 64, 16>}, {pipeline_mode = #tpu.pipeline_mode<synchronous>, transform_indices = @transform_1, window_bounds = array<i64: 16, 128>}, {pipeline_mode = #tpu.pipeline_mode<synchronous>, transform_indices = @transform_2, window_bounds = array<i64: 1, 128>}, {transform_indices = @transform_3, window_bounds = array<i64: 64, 128>}]} {
    %c0 = arith.constant 0 : index
    %c0_0 = arith.constant 0 : index
    %0 = vector.load %arg1[%c0, %c0_0] : memref<64x16xf32, #tpu.memory_space<vmem>>, vector<64x16xf32>
    %c0_1 = arith.constant 0 : index
    %c0_2 = arith.constant 0 : index
    %1 = vector.load %arg2[%c0_1, %c0_2] : memref<16x128xf32, #tpu.memory_space<vmem>>, vector<16x128xf32>
    %cst = arith.constant dense<0.000000e+00> : vector<64x128xf32>
    %2 = tpu.matmul %0, %1, %cst {dimension_numbers = #tpu.dot_dimension_numbers<[1], [0], [0], [1], [0, 0, 1, 1], [], []>} : vector<64x16xf32>, vector<16x128xf32>, vector<64x128xf32> -> vector<64x128xf32>
    %c0_3 = arith.constant 0 : index
    %c0_4 = arith.constant 0 : index
    %3 = vector.load %arg3[%c0_3, %c0_4] : memref<1x128xf32, #tpu.memory_space<vmem>>, vector<1x128xf32>
    %4 = vector.broadcast %3 : vector<1x128xf32> to vector<64x128xf32>
    %5 = arith.addf %2, %4 : vector<64x128xf32>
    %c0_5 = arith.constant 0 : index
    %c0_6 = arith.constant 0 : index
    %6 = vector.load %arg4[%c0_5, %c0_6] : memref<64x128xf32, #tpu.memory_space<vmem>>, vector<64x128xf32>
    tpu.vector_store %arg4[%c0_5, %c0_6], %5 {strides = array<i32>} : memref<64x128xf32, #tpu.memory_space<vmem>>, vector<64x128xf32>,
    return
  }
  func.func @transform_0(%arg0: i32) -> (i32, i32) {
    %c0_i32 = arith.constant 0 : i32
    %c0_i32_0 = arith.constant 0 : i32
    return %arg0, %c0_i32 : i32, i32
  }
  func.func @transform_1(%arg0: i32) -> (i32, i32) {
    %c0_i32 = arith.constant 0 : i32
    %c0_i32_0 = arith.constant 0 : i32
    %c0_i32_1 = arith.constant 0 : i32
    return %c0_i32, %c0_i32_0 : i32, i32
  }
  func.func @transform_2(%arg0: i32) -> (i32, i32) {
    %c0_i32 = arith.constant 0 : i32
    %c0_i32_0 = arith.constant 0 : i32
    %c0_i32_1 = arith.constant 0 : i32
    return %c0_i32, %c0_i32_0 : i32, i32
  }
  func.func @transform_3(%arg0: i32) -> (i32, i32) {
    %c0_i32 = arith.constant 0 : i32
    %c0_i32_0 = arith.constant 0 : i32
    return %arg0, %c0_i32 : i32, i32
  }
}

</mosaic_0001>

<llo_original>
// kernel: tpu_custom_call.1
$region0: #{tpu_custom_call.1}
  #allocation0 [shape = 'u32[]', space=smem, size = 0x4, offset = 0x4, fixed_abs, tag = 'smem constant byte address 0x4 - core index']
  #allocation1 [shape = 'u32[72,128]{1,0:T(1,128)}', space=vmem, size = 0x9000, scoped, tag = 'internal scratch']
  %s0 = inlined_call_operand.vmem [shape: f32[64,16], index: 0, kind: input, shape index: {}]
  %s1 = inlined_call_operand.vmem [shape: f32[16,128], index: 1, kind: input, shape index: {}]
  %s2 = inlined_call_operand.vmem [shape: f32[1,128], index: 2, kind: input, shape index: {}]
  %s3 = inlined_call_operand.hbm [shape: f32[64,128], index: 3, kind: output, shape index: {}]
  %s4 = sld [smem:[#allocation0]]
  $region22: #{tpu_custom_call.1} parent=0
    _
  %s6 = ssub.s32 1, %s4
  %s7 = scalar_select 0, %s6, %s4
  $region1: #{tpu_custom_call.1} parent=0
    #allocation2 [shape = 'u8[32768]{0}', space=vmem, size = 0x8000, scoped, tag = 'output window, operand 0, single buffered']
    #allocation3 [shape = 's32[1]{0}', space=sflag, size = 0x4, scoped, tag = 'scoped memory for tpu_custom_call.1']
    %8 = vsyncpa [#allocation3], 0
    // Predicated region
    $region2: #{tpu_custom_call.1} parent=1 // pred_check
      _
    $region3: #{tpu_custom_call.1} parent=1 // pred_check_branch
      %10 = sbr.rel (0) target = $region5
    $region4: #{tpu_custom_call.1} parent=1 // pred_region
      _
    $region5: #{tpu_custom_call.1} parent=1 // pred_fallthru
      _
    // Predicated region
    $region6: #{tpu_custom_call.1} parent=1 // pred_check
      _
    $region7: #{tpu_custom_call.1} parent=1 // pred_check_branch
      %12 = sbr.rel (0) target = $region9
    $region8: #{tpu_custom_call.1} parent=1 // pred_region
      _
    $region9: #{tpu_custom_call.1} parent=1 // pred_fallthru
      _
    // Predicated region
    $region10: #{tpu_custom_call.1} parent=1 // pred_check
      _
    $region11: #{tpu_custom_call.1} parent=1 // pred_check_branch
      %14 = sbr.rel (0) target = $region13
    $region12: #{tpu_custom_call.1} parent=1 // pred_region
      _
    $region13: #{tpu_custom_call.1} parent=1 // pred_fallthru
      _
    %v15 = vld [vmem:[%s0] sm:$0xff]
    %v16 = vld [vmem:[%s0 + $0x8] sm:$0xff]
    %v17 = vld [vmem:[%s0 + $0x10] sm:$0xff]
    %v18 = vld [vmem:[%s0 + $0x18] sm:$0xff]
    %v19 = vld [vmem:[%s0 + $0x20] sm:$0xff]
    %v20 = vld [vmem:[%s0 + $0x28] sm:$0xff]
    %v21 = vld [vmem:[%s0 + $0x30] sm:$0xff]
    %v22 = vld [vmem:[%s0 + $0x38] sm:$0xff]
    %v23 = vld [vmem:[%s1] sm:$0xff]
    %v24 = vld [vmem:[%s1 + $0x8] sm:$0xff]
    %v25 = vld [vmem:[%s2] sm:$0x1]
    %v27 = vperm.slane %v25, 0
    %vm29 = vcmask 130048
    %v31 = vsel %vm29, %v15, 0
    %v34 = vsel %vm29, %v16, 0
    %v37 = vsel %vm29, %v17, 0
    %v40 = vsel %vm29, %v18, 0
    %v43 = vsel %vm29, %v19, 0
    %v46 = vsel %vm29, %v20, 0
    %v49 = vsel %vm29, %v21, 0
    %v52 = vsel %vm29, %v22, 0
    %54 = vmatpush.msra.mxu0 0.0
    %55 = vmatpush.msra.mxu0 0.0
    %56 = vmatpush.msra.mxu0 0.0
    %57 = vmatpush.msra.mxu0 0.0
    %58 = vmatpush.msra.mxu0 0.0
    %59 = vmatpush.msra.mxu0 0.0
    %60 = vmatpush.msra.mxu0 0.0
    %61 = vmatpush.msra.mxu0 0.0
    %62 = vmatpush.msra.mxu0 0.0
    %63 = vmatpush.msra.mxu0 0.0
    %64 = vmatpush.msra.mxu0 0.0
    %65 = vmatpush.msra.mxu0 0.0
    %66 = vmatpush.msra.mxu0 0.0
    %67 = vmatpush.msra.mxu0 0.0
    %68 = vmatpush.msra.mxu0 %v24
    %69 = vmatpush.msra.mxu0 %v23
    %70 = vmatmul.f32.gmra.mxu0 %v31
    %v71 = vpop.f32.mrf.mxu0
    %v72 = vadd.f32 %v27, %v71
    %73 = vmatmul.f32.gmra.mxu0 %v34
    %v74 = vpop.f32.mrf.mxu0
    %v75 = vadd.f32 %v27, %v74
    %76 = vmatmul.f32.gmra.mxu0 %v37
    %v77 = vpop.f32.mrf.mxu0
    %v78 = vadd.f32 %v27, %v77
    %79 = vmatmul.f32.gmra.mxu0 %v40
    %v80 = vpop.f32.mrf.mxu0
    %v81 = vadd.f32 %v27, %v80
    %82 = vmatmul.f32.gmra.mxu0 %v43
    %v83 = vpop.f32.mrf.mxu0
    %v84 = vadd.f32 %v27, %v83
    %85 = vmatmul.f32.gmra.mxu0 %v46
    %v86 = vpop.f32.mrf.mxu0
    %v87 = vadd.f32 %v27, %v86
    %88 = vmatmul.f32.gmra.mxu0 %v49
    %v89 = vpop.f32.mrf.mxu0
    %v90 = vadd.f32 %v27, %v89
    %91 = vmatmul.f32.gmra.mxu0 %v52
    %v92 = vpop.f32.mrf.mxu0
    %v93 = vadd.f32 %v27, %v92
    %94 = vdwg.mxu0
    %95 = vst [vmem:[#allocation2] sm:$0xff] %v72
    %96 = vst [vmem:[#allocation2 + $0x8] sm:$0xff] %v75
    %97 = vst [vmem:[#allocation2 + $0x10] sm:$0xff] %v78
    %98 = vst [vmem:[#allocation2 + $0x18] sm:$0xff] %v81
    %99 = vst [vmem:[#allocation2 + $0x20] sm:$0xff] %v84
    %100 = vst [vmem:[#allocation2 + $0x28] sm:$0xff] %v87
    %101 = vst [vmem:[#allocation2 + $0x30] sm:$0xff] %v90
    %102 = vst [vmem:[#allocation2 + $0x38] sm:$0xff] %v93
    // Predicated region
    $region14: #{tpu_custom_call.1} parent=1 // pred_check
      _
    $region15: #{tpu_custom_call.1} parent=1 // pred_check_branch
      %104 = sbr.rel (0) target = $region17
    $region16: #{tpu_custom_call.1} parent=1 // pred_region
      %106 = vsyncadd [#allocation3], 0
      %s107 = sshll.u32 [#allocation2], 4
      %s108 = int_to_ptr.vmem [resolvable:$true] %s107
      %s109 = sshll.u32 %s3, 4
      %s110 = int_to_ptr.hbm [resolvable:$true] %s109
      %115 = dma.vmem_to_hbm [thread:$0]  %s108, 1024, %s110, [#allocation3], 128, 128, 8
    $region17: #{tpu_custom_call.1} parent=1 // pred_fallthru
      _
    // Predicated region
    $region18: #{tpu_custom_call.1} parent=1 // pred_check
      _
    $region19: #{tpu_custom_call.1} parent=1 // pred_check_branch
      %117 = sbr.rel (0) target = $region21
    $region20: #{tpu_custom_call.1} parent=1 // pred_region
      %119 = dma.done [#allocation3], 1024
    $region21: #{tpu_custom_call.1} parent=1 // pred_fallthru
      _
    %120 = vsyncpa [#allocation3], 1

</llo_original>
